<compile_context>
chip_gen: v6e
topology: v6e:2x2x1
jax: 0.10.0
libtpu: 0.0.40
codegen_flags: <defaults>
</compile_context>

<pallas_src>
import functools

import jax
import jax.numpy as jnp
from jax import lax
from jax.experimental import pallas as pl
from jax.experimental.pallas import tpu as pltpu


def _round_up(x, m):
    return ((x + m - 1) // m) * m


def _supcon_kernel(lab_r_ref, lab_c_ref, fr_ref, fc_ref, out_ref,
                   m_scr, l_scr, sm_scr, cnt_scr,
                   *, inv_temp, loss_scale, block_rows, block_cols):
    """One (row_tile, key_tile) step of the online SupCon reduction.

    lab_r_ref : [tm, 1]   int32  anchor-row sample/label ids (-1 == padding)
    lab_c_ref : [1, tk]   int32  contrast-column sample/label ids (-1 == padding)
    fr_ref    : [tm, D]   bf16   anchor feature rows
    fc_ref    : [tk, D]   bf16   contrast feature rows (key tile)
    out_ref   : [tm, 128] f32    per-row loss, lane-broadcast (written on last key tile)
    scratch   : [tm, 1]   f32 x4 running max / exp-sum / sum(mask*logits) / sum(mask)
    """
    i = pl.program_id(0)
    j = pl.program_id(1)

    @pl.when(j == 0)
    def _init():
        m_scr[...] = jnp.full_like(m_scr, -jnp.inf)
        l_scr[...] = jnp.zeros_like(l_scr)
        sm_scr[...] = jnp.zeros_like(sm_scr)
        cnt_scr[...] = jnp.zeros_like(cnt_scr)

    # logits tile = (A @ C^T) / temperature.  Contract the feature dim of both
    # operands directly (no in-kernel transpose of the key tile); bf16 in,
    # f32 accumulate on the MXU.  The divide is folded into a multiply.
    s = lax.dot_general(
        fr_ref[...], fc_ref[...],
        dimension_numbers=(((1,), (1,)), ((), ())),
        preferred_element_type=jnp.float32,
    ) * inv_temp                                                  # [tm, tk] f32

    lab_r = lab_r_ref[...]                                        # [tm, 1]
    lab_c = lab_c_ref[...]                                        # [1, tk]

    # Rebuild masks in-kernel (no [N, N] mask ever leaves HBM).
    row_ids = i * block_rows + lax.broadcasted_iota(
        jnp.int32, (block_rows, block_cols), 0)
    col_ids = j * block_cols + lax.broadcasted_iota(
        jnp.int32, (block_rows, block_cols), 1)
    not_diag = row_ids != col_ids                                 # torch logits_mask
    col_valid = lab_c >= 0                                        # exclude padded cols

    keep = jnp.logical_and(col_valid, not_diag)
    lm = jnp.where(keep, 1.0, 0.0)                                # denominator mask
    pos = jnp.where(jnp.logical_and(lab_r == lab_c, keep), 1.0, 0.0)  # positive mask

    # Online (flash-style) masked log-sum-exp over key tiles.  Using the
    # unmasked tile max (>= masked max) keeps exp() in range; the max cancels
    # exactly in the final LSE, matching the torch forward value.
    tile_max = jnp.max(s, axis=1, keepdims=True)
    m_new = jnp.maximum(m_scr[...], tile_max)
    alpha = jnp.exp(m_scr[...] - m_new)
    p = jnp.exp(s - m_new) * lm
    l_scr[...] = alpha * l_scr[...] + jnp.sum(p, axis=1, keepdims=True)
    m_scr[...] = m_new

    # sum(mask * log_prob) = sum(mask * logits) - sum(mask) * LSE
    sm_scr[...] = sm_scr[...] + jnp.sum(pos * s, axis=1, keepdims=True)
    cnt_scr[...] = cnt_scr[...] + jnp.sum(pos, axis=1, keepdims=True)

    @pl.when(j == pl.num_programs(1) - 1)
    def _finalize():
        lse = m_scr[...] + jnp.log(l_scr[...])                    # [tm, 1]
        # Rows with zero positives give 0/0 = NaN, matching the torch impl.
        mean_log_prob_pos = sm_scr[...] / cnt_scr[...] - lse
        loss_rows = loss_scale * mean_log_prob_pos                # -(t / base_t)
        loss_rows = jnp.where(lab_r >= 0, loss_rows, 0.0)         # zero padded rows
        out_ref[...] = jnp.broadcast_to(loss_rows, out_ref.shape).astype(out_ref.dtype)


def supcon_loss(features, labels=None, mask=None, *, temperature=0.07,
                contrast_mode="all", base_temperature=0.07,
                block_rows=256, block_cols=512, matmul_dtype=jnp.bfloat16):
    """JAX/Pallas equivalent of SupConLoss.forward.

    features : [bsz, n_views, ...] float array.
    labels   : optional [bsz] non-negative integer class labels.
    mask     : optional [bsz, bsz] float mask (falls back to plain JAX).
    """
    if features.ndim < 3:
        raise ValueError("`features` needs to be [bsz, n_views, ...]")
    if features.ndim > 3:
        features = features.reshape(features.shape[0], features.shape[1], -1)

    bsz, n_views, d = features.shape
    features = features.astype(jnp.float32)

    if labels is not None and mask is not None:
        raise ValueError("Cannot define both `labels` and `mask`")

    if mask is not None:
        # TODO(synk): an explicit (possibly asymmetric) [bsz, bsz] mask cannot be
        # reconstructed from a label vector; this rare path stays in plain JAX.
        return _supcon_reference(features, mask=mask.astype(jnp.float32),
                                 temperature=temperature,
                                 contrast_mode=contrast_mode,
                                 base_temperature=base_temperature)

    if labels is None:
        sample_ids = jnp.arange(bsz, dtype=jnp.int32)             # SimCLR identity mask
    else:
        labels = jnp.asarray(labels).reshape(-1)
        if labels.shape[0] != bsz:
            raise ValueError("Num of labels does not match num of features")
        sample_ids = labels.astype(jnp.int32)                     # must be >= 0

    n_contrast = n_views * bsz
    # torch.cat(torch.unbind(features, dim=1), dim=0) -> view-major [N, D]
    contrast_feature = jnp.transpose(features, (1, 0, 2)).reshape(n_contrast, d)
    contrast_ids = jnp.tile(sample_ids, n_views)                  # id[r] = id[r % bsz]

    if contrast_mode == "one":
        anchor_feature = contrast_feature[:bsz]                   # == features[:, 0]
        anchor_ids = contrast_ids[:bsz]
        n_anchor = bsz
    elif contrast_mode == "all":
        anchor_feature = contrast_feature
        anchor_ids = contrast_ids
        n_anchor = n_contrast
    else:
        raise ValueError(f"Unknown mode: {contrast_mode}")

    # Tile sizes (clamped for small problems; 8/128 aligned).
    tm = min(block_rows, _round_up(n_anchor, 8))
    tk = min(block_cols, _round_up(n_contrast, 128))
    n_rows = _round_up(n_anchor, tm)
    n_cols = _round_up(n_contrast, tk)

    f_rows = jnp.zeros((n_rows, d), matmul_dtype).at[:n_anchor].set(
        anchor_feature.astype(matmul_dtype))
    f_cols = jnp.zeros((n_cols, d), matmul_dtype).at[:n_contrast].set(
        contrast_feature.astype(matmul_dtype))
    lab_rows = jnp.full((n_rows, 1), -1, jnp.int32).at[:n_anchor, 0].set(anchor_ids)
    lab_cols = jnp.full((1, n_cols), -1, jnp.int32).at[0, :n_contrast].set(contrast_ids)

    kernel = functools.partial(
        _supcon_kernel,
        inv_temp=float(1.0 / temperature),
        loss_scale=float(-(temperature / base_temperature)),
        block_rows=tm, block_cols=tk)

    itemsize = jnp.dtype(matmul_dtype).itemsize
    per_row = pl.pallas_call(
        kernel,
        out_shape=jax.ShapeDtypeStruct((n_rows, 128), jnp.float32),
        grid=(n_rows // tm, n_cols // tk),
        in_specs=[
            pl.BlockSpec((tm, 1), lambda i, j: (i, 0)),           # anchor ids
            pl.BlockSpec((1, tk), lambda i, j: (0, j)),           # contrast ids
            pl.BlockSpec((tm, d), lambda i, j: (i, 0)),           # anchor features
            pl.BlockSpec((tk, d), lambda i, j: (j, 0)),           # contrast features
        ],
        out_specs=pl.BlockSpec((tm, 128), lambda i, j: (i, 0)),
        scratch_shapes=[
            pltpu.VMEM((tm, 1), jnp.float32),                     # running max
            pltpu.VMEM((tm, 1), jnp.float32),                     # running exp-sum
            pltpu.VMEM((tm, 1), jnp.float32),                     # sum(mask * logits)
            pltpu.VMEM((tm, 1), jnp.float32),                     # sum(mask)
        ],
        compiler_params=pltpu.CompilerParams(
            dimension_semantics=("parallel", "arbitrary"),
            vmem_limit_bytes=32 * 1024 * 1024),
        cost_estimate=pl.CostEstimate(
            flops=2 * n_rows * n_cols * d,
            transcendentals=n_rows * n_cols,
            bytes_accessed=((n_rows + n_cols) * d * itemsize
                            + (n_rows + n_cols) * 4 + n_rows * 128 * 4)),
    )(lab_rows, lab_cols, f_rows, f_cols)

    # Padded rows wrote exactly 0, so sum / true anchor count == torch's
    # loss.view(anchor_count, batch_size).mean().
    return jnp.sum(per_row[:, 0]) / n_anchor


def _supcon_reference(features, labels=None, mask=None, temperature=0.07,
                      contrast_mode="all", base_temperature=0.07):
    """Pure-JAX mirror of the PyTorch forward (used as reference + mask fallback)."""
    bsz, n_views, d = features.shape
    if labels is None and mask is None:
        mask = jnp.eye(bsz, dtype=jnp.float32)
    elif labels is not None:
        labels = jnp.asarray(labels).reshape(-1, 1)
        mask = (labels == labels.T).astype(jnp.float32)
    else:
        mask = mask.astype(jnp.float32)
    contrast_count = n_views
    contrast_feature = jnp.transpose(features, (1, 0, 2)).reshape(n_views * bsz, d)
    if contrast_mode == "one":
        anchor_feature = features[:, 0]
        anchor_count = 1
    elif contrast_mode == "all":
        anchor_feature = contrast_feature
        anchor_count = contrast_count
    else:
        raise ValueError(f"Unknown mode: {contrast_mode}")
    logits = jnp.dot(anchor_feature, contrast_feature.T) / temperature
    logits = logits - jnp.max(logits, axis=1, keepdims=True)
    mask = jnp.tile(mask, (anchor_count, contrast_count))
    n_a = anchor_count * bsz
    logits_mask = jnp.ones_like(mask).at[jnp.arange(n_a), jnp.arange(n_a)].set(0.0)
    mask = mask * logits_mask
    exp_logits = jnp.exp(logits) * logits_mask
    log_prob = logits - jnp.log(jnp.sum(exp_logits, axis=1, keepdims=True))
    mlpp = jnp.sum(mask * log_prob, axis=1) / jnp.sum(mask, axis=1)
    return jnp.mean(-(temperature / base_temperature) * mlpp)


if __name__ == "__main__":
    key = jax.random.PRNGKey(0)

    # --- small demo shapes: bsz=8, n_views=2, feat_dim=128 ---
    bsz, n_views, feat_dim = 8, 2, 128
    k1, k2, k3, k4 = jax.random.split(key, 4)
    feats = jax.random.normal(k1, (bsz, n_views, feat_dim), dtype=jnp.float32)
    feats = feats / jnp.linalg.norm(feats, axis=-1, keepdims=True)   # L2-normalized
    labels = jax.random.randint(k2, (bsz,), 0, 3)

    # The kernel feeds the MXU bf16 inputs (f32 accumulate); compare against a
    # reference computed on the identically-rounded features.
    feats_ref = feats.astype(jnp.bfloat16).astype(jnp.float32)

    # 1) unsupervised (SimCLR identity mask), mode='all'
    out1 = jax.block_until_ready(jax.jit(lambda f: supcon_loss(f))(feats))
    ref1 = _reference1 = _supcon_reference(feats_ref)
    assert jnp.allclose(out1, ref1, rtol=1e-4, atol=1e-4), (out1, ref1)

    # 2) supervised labels, mode='all'
    out2 = jax.block_until_ready(
        jax.jit(lambda f, l: supcon_loss(f, labels=l))(feats, labels))
    ref2 = _supcon_reference(feats_ref, labels=labels)
    assert jnp.allclose(out2, ref2, rtol=1e-4, atol=1e-4), (out2, ref2)

    # 3) supervised labels, mode='one'
    out3 = jax.block_until_ready(
        jax.jit(lambda f, l: supcon_loss(f, labels=l, contrast_mode="one"))(feats, labels))
    ref3 = _supcon_reference(feats_ref, labels=labels, contrast_mode="one")
    assert jnp.allclose(out3, ref3, rtol=1e-4, atol=1e-4), (out3, ref3)

    # 4) multi-tile path (row + key tiling, row/col padding exercised)
    bsz_l, n_views_l, d_l = 320, 2, 128
    feats_l = jax.random.normal(k3, (bsz_l, n_views_l, d_l), dtype=jnp.float32)
    feats_l = feats_l / jnp.linalg.norm(feats_l, axis=-1, keepdims=True)
    labels_l = jax.random.randint(k4, (bsz_l,), 0, 5)
    out4 = jax.block_until_ready(
        jax.jit(lambda f, l: supcon_loss(f, labels=l))(feats_l, labels_l))
    ref4 = _supcon_reference(feats_l.astype(jnp.bfloat16).astype(jnp.float32),
                             labels=labels_l)
    assert jnp.allclose(out4, ref4, rtol=5e-4, atol=5e-4), (out4, ref4)

    print("KERNEL_OK")
</pallas_src>

<mosaic_0001>
module attributes {stable_mosaic.version = 11 : i64} {
  func.func @_supcon_kernel(%arg0: i32, %arg1: i32, %arg2: memref<16x1xi32, #tpu.memory_space<vmem>>, %arg3: memref<1x128xi32, #tpu.memory_space<vmem>>, %arg4: memref<16x128xbf16, #tpu.memory_space<vmem>>, %arg5: memref<128x128xbf16, #tpu.memory_space<vmem>>, %arg6: memref<16x128xf32, #tpu.memory_space<vmem>>, %arg7: memref<16x1xf32, #tpu.memory_space<vmem>>, %arg8: memref<16x1xf32, #tpu.memory_space<vmem>>, %arg9: memref<16x1xf32, #tpu.memory_space<vmem>>, %arg10: memref<16x1xf32, #tpu.memory_space<vmem>>) attributes {dimension_semantics = [#tpu.dimension_semantics<parallel>, #tpu.dimension_semantics<arbitrary>], iteration_bounds = array<i64: 1, 1>, scalar_prefetch = 0 : i64, scratch_operands = 4 : i64, tpu.core_type = #tpu.core_type<tc>, window_params = [{transform_indices = @transform_0, window_bounds = array<i64: 16, 1>}, {transform_indices = @transform_1, window_bounds = array<i64: 1, 128>}, {transform_indices = @transform_2, window_bounds = array<i64: 16, 128>}, {transform_indices = @transform_3, window_bounds = array<i64: 128, 128>}, {transform_indices = @transform_4, window_bounds = array<i64: 16, 128>}]} {
    %c0_i32 = arith.constant 0 : i32
    %0 = arith.cmpi eq, %arg1, %c0_i32 : i32
    %1 = arith.extui %0 : i1 to i32
    %c0_i32_0 = arith.constant 0 : i32
    %2 = arith.cmpi ne, %1, %c0_i32_0 : i32
    scf.if %2 {
      %cst_38 = arith.constant 0xFF800000 : f32
      %65 = vector.broadcast %cst_38 : f32 to vector<16x1xf32>
      %c0_39 = arith.constant 0 : index
      %c0_40 = arith.constant 0 : index
      %66 = vector.load %arg7[%c0_39, %c0_40] : memref<16x1xf32, #tpu.memory_space<vmem>>, vector<16x1xf32>
      tpu.vector_store %arg7[%c0_39, %c0_40], %65 {strides = array<i32>} : memref<16x1xf32, #tpu.memory_space<vmem>>, vector<16x1xf32>,
      %cst_41 = arith.constant 0.000000e+00 : f32
      %67 = vector.broadcast %cst_41 : f32 to vector<16x1xf32>
      %c0_42 = arith.constant 0 : index
      %c0_43 = arith.constant 0 : index
      %68 = vector.load %arg8[%c0_42, %c0_43] : memref<16x1xf32, #tpu.memory_space<vmem>>, vector<16x1xf32>
      tpu.vector_store %arg8[%c0_42, %c0_43], %67 {strides = array<i32>} : memref<16x1xf32, #tpu.memory_space<vmem>>, vector<16x1xf32>,
      %cst_44 = arith.constant 0.000000e+00 : f32
      %69 = vector.broadcast %cst_44 : f32 to vector<16x1xf32>
      %c0_45 = arith.constant 0 : index
      %c0_46 = arith.constant 0 : index
      %70 = vector.load %arg9[%c0_45, %c0_46] : memref<16x1xf32, #tpu.memory_space<vmem>>, vector<16x1xf32>
      tpu.vector_store %arg9[%c0_45, %c0_46], %69 {strides = array<i32>} : memref<16x1xf32, #tpu.memory_space<vmem>>, vector<16x1xf32>,
      %cst_47 = arith.constant 0.000000e+00 : f32
      %71 = vector.broadcast %cst_47 : f32 to vector<16x1xf32>
      %c0_48 = arith.constant 0 : index
      %c0_49 = arith.constant 0 : index
      %72 = vector.load %arg10[%c0_48, %c0_49] : memref<16x1xf32, #tpu.memory_space<vmem>>, vector<16x1xf32>
      tpu.vector_store %arg10[%c0_48, %c0_49], %71 {strides = array<i32>} : memref<16x1xf32, #tpu.memory_space<vmem>>, vector<16x1xf32>,
    } else {
    }
    %c0 = arith.constant 0 : index
    %c0_1 = arith.constant 0 : index
    %3 = vector.load %arg4[%c0, %c0_1] : memref<16x128xbf16, #tpu.memory_space<vmem>>, vector<16x128xbf16>
    %c0_2 = arith.constant 0 : index
    %c0_3 = arith.constant 0 : index
    %4 = vector.load %arg5[%c0_2, %c0_3] : memref<128x128xbf16, #tpu.memory_space<vmem>>, vector<128x128xbf16>
    %cst = arith.constant dense<0.000000e+00> : vector<16x128xf32>
    %5 = tpu.matmul %3, %4, %cst {dimension_numbers = #tpu.dot_dimension_numbers<[1], [1], [0], [0], [0, 0, 1, 0], [], []>} : vector<16x128xbf16>, vector<128x128xbf16>, vector<16x128xf32> -> vector<16x128xf32>
    %cst_4 = arith.constant 14.2857141 : f32
    %6 = vector.broadcast %cst_4 : f32 to vector<16x128xf32>
    %7 = arith.mulf %5, %6 : vector<16x128xf32>
    %c0_5 = arith.constant 0 : index
    %c0_6 = arith.constant 0 : index
    %8 = vector.load %arg2[%c0_5, %c0_6] : memref<16x1xi32, #tpu.memory_space<vmem>>, vector<16x1xi32>
    %c0_7 = arith.constant 0 : index
    %c0_8 = arith.constant 0 : index
    %9 = vector.load %arg3[%c0_7, %c0_8] : memref<1x128xi32, #tpu.memory_space<vmem>>, vector<1x128xi32>
    %c16_i32 = arith.constant 16 : i32
    %10 = arith.muli %arg0, %c16_i32 : i32
    %11 = tpu.iota {dimensions = array<i32: 0>} : vector<16x128xi32>
    %12 = vector.broadcast %10 : i32 to vector<16x128xi32>
    %13 = arith.addi %12, %11 : vector<16x128xi32>
    %c128_i32 = arith.constant 128 : i32
    %14 = arith.muli %arg1, %c128_i32 : i32
    %15 = tpu.iota {dimensions = array<i32: 1>} : vector<16x128xi32>
    %16 = vector.broadcast %14 : i32 to vector<16x128xi32>
    %17 = arith.addi %16, %15 : vector<16x128xi32>
    %18 = arith.cmpi ne, %13, %17 : vector<16x128xi32>
    %c0_i32_9 = arith.constant 0 : i32
    %19 = vector.broadcast %c0_i32_9 : i32 to vector<1x128xi32>
    %20 = arith.cmpi sge, %9, %19 : vector<1x128xi32>
    %21 = vector.broadcast %20 : vector<1x128xi1> to vector<16x128xi1>
    %22 = arith.andi %21, %18 : vector<16x128xi1>
    %cst_10 = arith.constant 1.000000e+00 : f32
    %cst_11 = arith.constant 0.000000e+00 : f32
    %23 = vector.broadcast %cst_10 : f32 to vector<16x128xf32>
    %24 = vector.broadcast %cst_11 : f32 to vector<16x128xf32>
    %25 = arith.select %22, %23, %24 : vector<16x128xi1>, vector<16x128xf32>
    %26 = vector.broadcast %8 : vector<16x1xi32> to vector<16x128xi32>
    %27 = vector.broadcast %9 : vector<1x128xi32> to vector<16x128xi32>
    %28 = arith.cmpi eq, %26, %27 : vector<16x128xi32>
    %29 = arith.andi %28, %22 : vector<16x128xi1>
    %cst_12 = arith.constant 1.000000e+00 : f32
    %cst_13 = arith.constant 0.000000e+00 : f32
    %30 = vector.broadcast %cst_12 : f32 to vector<16x128xf32>
    %31 = vector.broadcast %cst_13 : f32 to vector<16x128xf32>
    %32 = arith.select %29, %30, %31 : vector<16x128xi1>, vector<16x128xf32>
    %cst_14 = arith.constant dense<0xFF800000> : vector<16xf32>
    %33 = vector.multi_reduction <maximumf>, %7, %cst_14 [1] : vector<16x128xf32> to vector<16xf32>
    %34 = vector.shape_cast %33 : vector<16xf32> to vector<16x1xf32>
    %c0_15 = arith.constant 0 : index
    %c0_16 = arith.constant 0 : index
    %35 = vector.load %arg7[%c0_15, %c0_16] : memref<16x1xf32, #tpu.memory_space<vmem>>, vector<16x1xf32>
    %36 = arith.maximumf %35, %34 : vector<16x1xf32>
    %c0_17 = arith.constant 0 : index
    %c0_18 = arith.constant 0 : index
    %37 = vector.load %arg7[%c0_17, %c0_18] : memref<16x1xf32, #tpu.memory_space<vmem>>, vector<16x1xf32>
    %38 = arith.subf %37, %36 : vector<16x1xf32>
    %39 = math.exp %38 : vector<16x1xf32>
    %40 = vector.broadcast %36 : vector<16x1xf32> to vector<16x128xf32>
    %41 = arith.subf %7, %40 : vector<16x128xf32>
    %42 = math.exp %41 : vector<16x128xf32>
    %43 = arith.mulf %42, %25 : vector<16x128xf32>
    %c0_19 = arith.constant 0 : index
    %c0_20 = arith.constant 0 : index
    %44 = vector.load %arg8[%c0_19, %c0_20] : memref<16x1xf32, #tpu.memory_space<vmem>>, vector<16x1xf32>
    %45 = arith.mulf %39, %44 : vector<16x1xf32>
    %cst_21 = arith.constant dense<0.000000e+00> : vector<16xf32>
    %46 = vector.multi_reduction <add>, %43, %cst_21 [1] : vector<16x128xf32> to vector<16xf32>
    %47 = vector.shape_cast %46 : vector<16xf32> to vector<16x1xf32>
    %48 = arith.addf %45, %47 : vector<16x1xf32>
    %c0_22 = arith.constant 0 : index
    %c0_23 = arith.constant 0 : index
    %49 = vector.load %arg8[%c0_22, %c0_23] : memref<16x1xf32, #tpu.memory_space<vmem>>, vector<16x1xf32>
    tpu.vector_store %arg8[%c0_22, %c0_23], %48 {strides = array<i32>} : memref<16x1xf32, #tpu.memory_space<vmem>>, vector<16x1xf32>,
    %c0_24 = arith.constant 0 : index
    %c0_25 = arith.constant 0 : index
    %50 = vector.load %arg7[%c0_24, %c0_25] : memref<16x1xf32, #tpu.memory_space<vmem>>, vector<16x1xf32>
    tpu.vector_store %arg7[%c0_24, %c0_25], %36 {strides = array<i32>} : memref<16x1xf32, #tpu.memory_space<vmem>>, vector<16x1xf32>,
    %c0_26 = arith.constant 0 : index
    %c0_27 = arith.constant 0 : index
    %51 = vector.load %arg9[%c0_26, %c0_27] : memref<16x1xf32, #tpu.memory_space<vmem>>, vector<16x1xf32>
    %52 = arith.mulf %32, %7 : vector<16x128xf32>
    %cst_28 = arith.constant dense<0.000000e+00> : vector<16xf32>
    %53 = vector.multi_reduction <add>, %52, %cst_28 [1] : vector<16x128xf32> to vector<16xf32>
    %54 = vector.shape_cast %53 : vector<16xf32> to vector<16x1xf32>
    %55 = arith.addf %51, %54 : vector<16x1xf32>
    %c0_29 = arith.constant 0 : index
    %c0_30 = arith.constant 0 : index
    %56 = vector.load %arg9[%c0_29, %c0_30] : memref<16x1xf32, #tpu.memory_space<vmem>>, vector<16x1xf32>
    tpu.vector_store %arg9[%c0_29, %c0_30], %55 {strides = array<i32>} : memref<16x1xf32, #tpu.memory_space<vmem>>, vector<16x1xf32>,
    %c0_31 = arith.constant 0 : index
    %c0_32 = arith.constant 0 : index
    %57 = vector.load %arg10[%c0_31, %c0_32] : memref<16x1xf32, #tpu.memory_space<vmem>>, vector<16x1xf32>
    %cst_33 = arith.constant dense<0.000000e+00> : vector<16xf32>
    %58 = vector.multi_reduction <add>, %32, %cst_33 [1] : vector<16x128xf32> to vector<16xf32>
    %59 = vector.shape_cast %58 : vector<16xf32> to vector<16x1xf32>
    %60 = arith.addf %57, %59 : vector<16x1xf32>
    %c0_34 = arith.constant 0 : index
    %c0_35 = arith.constant 0 : index
    %61 = vector.load %arg10[%c0_34, %c0_35] : memref<16x1xf32, #tpu.memory_space<vmem>>, vector<16x1xf32>
    tpu.vector_store %arg10[%c0_34, %c0_35], %60 {strides = array<i32>} : memref<16x1xf32, #tpu.memory_space<vmem>>, vector<16x1xf32>,
    %c0_i32_36 = arith.constant 0 : i32
    %62 = arith.cmpi eq, %arg1, %c0_i32_36 : i32
    %63 = arith.extui %62 : i1 to i32
    %c0_i32_37 = arith.constant 0 : i32
    %64 = arith.cmpi ne, %63, %c0_i32_37 : i32
    scf.if %64 {
      %c0_38 = arith.constant 0 : index
      %c0_39 = arith.constant 0 : index
      %65 = vector.load %arg7[%c0_38, %c0_39] : memref<16x1xf32, #tpu.memory_space<vmem>>, vector<16x1xf32>
      %c0_40 = arith.constant 0 : index
      %c0_41 = arith.constant 0 : index
      %66 = vector.load %arg8[%c0_40, %c0_41] : memref<16x1xf32, #tpu.memory_space<vmem>>, vector<16x1xf32>
      %67 = math.log %66 : vector<16x1xf32>
      %68 = arith.addf %65, %67 : vector<16x1xf32>
      %c0_42 = arith.constant 0 : index
      %c0_43 = arith.constant 0 : index
      %69 = vector.load %arg9[%c0_42, %c0_43] : memref<16x1xf32, #tpu.memory_space<vmem>>, vector<16x1xf32>
      %c0_44 = arith.constant 0 : index
      %c0_45 = arith.constant 0 : index
      %70 = vector.load %arg10[%c0_44, %c0_45] : memref<16x1xf32, #tpu.memory_space<vmem>>, vector<16x1xf32>
      %71 = arith.divf %69, %70 : vector<16x1xf32>
      %72 = arith.subf %71, %68 : vector<16x1xf32>
      %cst_46 = arith.constant -1.000000e+00 : f32
      %73 = vector.broadcast %cst_46 : f32 to vector<16x1xf32>
      %74 = arith.mulf %73, %72 : vector<16x1xf32>
      %c0_i32_47 = arith.constant 0 : i32
      %75 = vector.broadcast %c0_i32_47 : i32 to vector<16x1xi32>
      %76 = arith.cmpi sge, %8, %75 : vector<16x1xi32>
      %cst_48 = arith.constant 0.000000e+00 : f32
      %77 = vector.broadcast %cst_48 : f32 to vector<16x1xf32>
      %78 = arith.select %76, %74, %77 : vector<16x1xi1>, vector<16x1xf32>
      %79 = vector.shape_cast %78 : vector<16x1xf32> to vector<16x1xf32>
      %80 = vector.broadcast %79 : vector<16x1xf32> to vector<16x128xf32>
      %c0_49 = arith.constant 0 : index
      %c0_50 = arith.constant 0 : index
      %81 = vector.load %arg6[%c0_49, %c0_50] : memref<16x128xf32, #tpu.memory_space<vmem>>, vector<16x128xf32>
      tpu.vector_store %arg6[%c0_49, %c0_50], %80 {strides = array<i32>} : memref<16x128xf32, #tpu.memory_space<vmem>>, vector<16x128xf32>,
    } else {
    }
    return
  }
  func.func @transform_0(%arg0: i32, %arg1: i32) -> (i32, i32) {
    %c0_i32 = arith.constant 0 : i32
    %c0_i32_0 = arith.constant 0 : i32
    return %arg0, %c0_i32 : i32, i32
  }
  func.func @transform_1(%arg0: i32, %arg1: i32) -> (i32, i32) {
    %c0_i32 = arith.constant 0 : i32
    %c0_i32_0 = arith.constant 0 : i32
    return %c0_i32, %arg1 : i32, i32
  }
  func.func @transform_2(%arg0: i32, %arg1: i32) -> (i32, i32) {
    %c0_i32 = arith.constant 0 : i32
    %c0_i32_0 = arith.constant 0 : i32
    return %arg0, %c0_i32 : i32, i32
  }
  func.func @transform_3(%arg0: i32, %arg1: i32) -> (i32, i32) {
    %c0_i32 = arith.constant 0 : i32
    %c0_i32_0 = arith.constant 0 : i32
    return %arg1, %c0_i32 : i32, i32
  }
  func.func @transform_4(%arg0: i32, %arg1: i32) -> (i32, i32) {
    %c0_i32 = arith.constant 0 : i32
    %c0_i32_0 = arith.constant 0 : i32
    return %arg0, %c0_i32 : i32, i32
  }
}

</mosaic_0001>

<llo_original>
// kernel: _lambda_.1
$region0: #{_lambda_.1}
  #allocation0 [shape = 'u32[]', space=smem, size = 0x4, offset = 0x4, fixed_abs, tag = 'smem constant byte address 0x4 - core index']
  #allocation1 [shape = 'u32[144,128]{1,0:T(1,128)}', space=vmem, size = 0x12000, scoped, tag = 'internal scratch']
  #allocation2 [shape = 'f32[16,1]{1,0:T(8,128)}', space=vmem, size = 0x2000, scoped, tag = 'scratch operand']
  #allocation3 [shape = 'f32[16,1]{1,0:T(8,128)}', space=vmem, size = 0x2000, scoped, tag = 'scratch operand']
  #allocation4 [shape = 'f32[16,1]{1,0:T(8,128)}', space=vmem, size = 0x2000, scoped, tag = 'scratch operand']
  #allocation5 [shape = 'f32[16,1]{1,0:T(8,128)}', space=vmem, size = 0x2000, scoped, tag = 'scratch operand']
  %s0 = inlined_call_operand.vmem [shape: s32[16,1], index: 0, kind: input, shape index: {}]
  %s1 = inlined_call_operand.vmem [shape: s32[1,128], index: 1, kind: input, shape index: {}]
  %s2 = inlined_call_operand.vmem [shape: bf16[16,128], index: 2, kind: input, shape index: {}]
  %s3 = inlined_call_operand.vmem [shape: bf16[128,128], index: 3, kind: input, shape index: {}]
  %s4 = inlined_call_operand.vmem [shape: f32[16,128], index: 4, kind: output, shape index: {}]
  %s5 = sld [smem:[#allocation0]]
  $region34: #{_lambda_.1} parent=0
    _
  %s7 = ssub.s32 1, %s5
  %s8 = scalar_select 0, %s7, %s5
  // Predicated region
  $region2: #{_lambda_.1} parent=0 // pred_check
    _
  $region3: #{_lambda_.1} parent=0 // pred_check_branch
    %10 = sbr.rel (0) target = $region5
  $region4: #{_lambda_.1} parent=0 // pred_region
    _
  $region5: #{_lambda_.1} parent=0 // pred_fallthru
    _
  // Predicated region
  $region6: #{_lambda_.1} parent=0 // pred_check
    _
  $region7: #{_lambda_.1} parent=0 // pred_check_branch
    %12 = sbr.rel (0) target = $region9
  $region8: #{_lambda_.1} parent=0 // pred_region
    _
  $region9: #{_lambda_.1} parent=0 // pred_fallthru
    _
  // Predicated region
  $region10: #{_lambda_.1} parent=0 // pred_check
    _
  $region11: #{_lambda_.1} parent=0 // pred_check_branch
    %14 = sbr.rel (0) target = $region13
  $region12: #{_lambda_.1} parent=0 // pred_region
    _
  $region13: #{_lambda_.1} parent=0 // pred_fallthru
    _
  // Predicated region
  $region14: #{_lambda_.1} parent=0 // pred_check
    _
  $region15: #{_lambda_.1} parent=0 // pred_check_branch
    %16 = sbr.rel (0) target = $region17
  $region16: #{_lambda_.1} parent=0 // pred_region
    _
  $region17: #{_lambda_.1} parent=0 // pred_fallthru
    _
  %p18 = scmp.eq.s32.totalorder 0, 0
  // Predicated region
  $region18: #{_lambda_.1} parent=0 // pred_check
    %p19 = pneg %p18
  $region19: #{_lambda_.1} parent=0 // pred_check_branch
    %21 = sbr.rel (%p19) target = $region21
  $region20: #{_lambda_.1} parent=0 // pred_region
    %vm22 = vcmask 7168
    %23 = vst.msk [vmem:[#allocation2] sm:$0xff] %vm22, -inf
    %24 = vst.msk [vmem:[#allocation2 + $0x8] sm:$0xff] %vm22, -inf
    %25 = vst.msk [vmem:[#allocation3] sm:$0xff] %vm22, 0.0
    %26 = vst.msk [vmem:[#allocation3 + $0x8] sm:$0xff] %vm22, 0.0
    %27 = vst.msk [vmem:[#allocation4] sm:$0xff] %vm22, 0.0
    %28 = vst.msk [vmem:[#allocation4 + $0x8] sm:$0xff] %vm22, 0.0
    %29 = vst.msk [vmem:[#allocation5] sm:$0xff] %vm22, 0.0
    %30 = vst.msk [vmem:[#allocation5 + $0x8] sm:$0xff] %vm22, 0.0
  $region21: #{_lambda_.1} parent=0 // pred_fallthru
    _
  %v31 = vld [vmem:[%s2] sm:$0xf]
  %v32 = vld [vmem:[%s2 + $0x4] sm:$0xf]
  %v33 = vld [vmem:[%s3] sm:$0xf]
  %v34 = vld [vmem:[%s3 + $0x4] sm:$0xf]
  %v35 = vld [vmem:[%s3 + $0x8] sm:$0xf]
  %v36 = vld [vmem:[%s3 + $0xc] sm:$0xf]
  %v37 = vld [vmem:[%s3 + $0x10] sm:$0xf]
  %v38 = vld [vmem:[%s3 + $0x14] sm:$0xf]
  %v39 = vld [vmem:[%s3 + $0x18] sm:$0xf]
  %v40 = vld [vmem:[%s3 + $0x1c] sm:$0xf]
  %v41 = vld [vmem:[%s3 + $0x20] sm:$0xf]
  %v42 = vld [vmem:[%s3 + $0x24] sm:$0xf]
  %v43 = vld [vmem:[%s3 + $0x28] sm:$0xf]
  %v44 = vld [vmem:[%s3 + $0x2c] sm:$0xf]
  %v45 = vld [vmem:[%s3 + $0x30] sm:$0xf]
  %v46 = vld [vmem:[%s3 + $0x34] sm:$0xf]
  %v47 = vld [vmem:[%s3 + $0x38] sm:$0xf]
  %v48 = vld [vmem:[%s3 + $0x3c] sm:$0xf]
  %v51 = vunpack.c.l.b16 %v31
  %v52 = vunpack.c.l.b16 %v32
  %v53 = vpack.c.b16 %v52, %v51
  %v71 = vunpack.c.l.b16 %v33
  %v72 = vunpack.c.l.b16 %v34
  %v73 = vunpack.c.l.b16 %v35
  %v74 = vunpack.c.l.b16 %v36
  %v75 = vunpack.c.l.b16 %v37
  %v76 = vunpack.c.l.b16 %v38
  %v77 = vunpack.c.l.b16 %v39
  %v78 = vunpack.c.l.b16 %v40
  %v79 = vunpack.c.l.b16 %v41
  %v80 = vunpack.c.l.b16 %v42
  %v81 = vunpack.c.l.b16 %v43
  %v82 = vunpack.c.l.b16 %v44
  %v83 = vunpack.c.l.b16 %v45
  %v84 = vunpack.c.l.b16 %v46
  %v85 = vunpack.c.l.b16 %v47
  %v86 = vunpack.c.l.b16 %v48
  %v87 = vpack.c.b16 %v72, %v71
  %v88 = vpack.c.b16 %v74, %v73
  %v89 = vpack.c.b16 %v76, %v75
  %v90 = vpack.c.b16 %v78, %v77
  %v91 = vpack.c.b16 %v80, %v79
  %v92 = vpack.c.b16 %v82, %v81
  %v93 = vpack.c.b16 %v84, %v83
  %v94 = vpack.c.b16 %v86, %v85
  %103 = vmatprep.subr.bf16.mxu0 0
  %104 = vmatpush1.bf16.xpose.msra.mxu0 %v94
  %105 = vmatprep.subr.bf16.mxu0 0
  %106 = vmatpush1.bf16.xpose.msra.mxu0 %v93
  %107 = vmatprep.subr.bf16.mxu0 0
  %108 = vmatpush1.bf16.xpose.msra.mxu0 %v92
  %109 = vmatprep.subr.bf16.mxu0 0
  %110 = vmatpush1.bf16.xpose.msra.mxu0 %v91
  %111 = vmatprep.subr.bf16.mxu0 0
  %112 = vmatpush1.bf16.xpose.msra.mxu0 %v90
  %113 = vmatprep.subr.bf16.mxu0 0
  %114 = vmatpush1.bf16.xpose.msra.mxu0 %v89
  %115 = vmatprep.subr.bf16.mxu0 0
  %116 = vmatpush1.bf16.xpose.msra.mxu0 %v88
  %117 = vmatprep.subr.bf16.mxu0 0
  %118 = vmatpush1.bf16.xpose.msra.mxu0 %v87
  %119 = vmatprep.subr.bf16.mxu0 0
  %120 = vmatpush2.bf16.xpose.msra.mxu0 0
  %121 = vmatprep.subr.bf16.mxu0 0
  %122 = vmatpush2.bf16.xpose.msra.mxu0 0
  %123 = vmatprep.subr.bf16.mxu0 0
  %124 = vmatpush2.bf16.xpose.msra.mxu0 0
  %125 = vmatprep.subr.bf16.mxu0 0
  %126 = vmatpush2.bf16.xpose.msra.mxu0 0
  %127 = vmatprep.subr.bf16.mxu0 0
  %128 = vmatpush2.bf16.xpose.msra.mxu0 0
  %129 = vmatprep.subr.bf16.mxu0 0
  %130 = vmatpush2.bf16.xpose.msra.mxu0 0
  %131 = vmatprep.subr.bf16.mxu0 0
  %132 = vmatpush2.bf16.xpose.msra.mxu0 0
  %133 = vmatprep.subr.bf16.mxu0 0
  %134 = vmatpush2.bf16.xpose.msra.mxu0 0
  %135 = vmatprep.mubr.bf16.mxu0 0
  %136 = vmatmul.mubr.bf16.gmra.mxu0 %v53
  %v137 = vpop.f32.mrf.mxu0
  %v138 = vadd.f32 0.0, %v137
  %v139 = vpop.f32.mrf.mxu0
  %v140 = vpop.f32.mrf.mxu0
  %v141 = vadd.f32 0.0, %v140
  %v142 = vpop.f32.mrf.mxu0
  %143 = vdwg.mxu0
  %v144 = vmul.f32 %v138, 14.285714
  %v145 = vmul.f32 %v141, 14.285714
  %v146 = vld [vmem:[%s0] sm:$0xff]
  %v147 = vld [vmem:[%s0 + $0x8] sm:$0xff]
  %v148 = vld [vmem:[%s1] sm:$0x1]
  %s149 = smul.u32 0, 16
  %v150 = vlaneseq
  %v151 = vshrl.u32 %v150, 7
  %v152 = vadd.s32 %v151, 8
  %v153 = vstv %s149
  %v154 = vadd.s32 %v153, %v151
  %v155 = vadd.s32 %v153, %v152
  %s156 = smul.u32 0, 128
  %v157 = vlaneseq
  %v158 = vand.u32 %v157, 127
  %v159 = vstv %s156
  %v160 = vadd.s32 %v159, %v158
  %vm161 = vcmp.ne.s32.totalorder %v154, %v160
  %vm162 = vcmp.ne.s32.totalorder %v155, %v160
  %vm163 = vcmp.ge.s32.totalorder %v148, 0
  %v164 = vsel %vm163, 1, 0
  %v165 = vlaneseq
  %v166 = vshrl.u32 %v165, 7
  %v167 = vsub.s32 0, %v166
  %v168 = vrot.slane %v164, %v167
  %vm169 = vcmp.eq.s32.totalorder %v168, 1
  %vm170 = vmand %vm169, %vm161
  %vm171 = vmand %vm169, %vm162
  %v172 = vsel %vm170, 1.0, 0.0
  %v173 = vsel %vm171, 1.0, 0.0
  %174 = vset.pattern.permute.xlu0 0
  %175 = vperm.xlu0 %174, %v146
  %v176 = vpop.permute.xlu0 %175
  %177 = vset.pattern.permute.xlu0 0
  %178 = vperm.xlu0 %177, %v147
  %v179 = vpop.permute.xlu0 %178
  %v180 = vlaneseq
  %v181 = vshrl.u32 %v180, 7
  %v182 = vsub.s32 0, %v181
  %v183 = vrot.slane %v148, %v182
  %vm184 = vcmp.eq.s32.totalorder %v176, %v183
  %vm185 = vcmp.eq.s32.totalorder %v179, %v183
  %vm186 = vmand %vm184, %vm170
  %vm187 = vmand %vm185, %vm171
  %v188 = vsel %vm186, 1.0, 0.0
  %v189 = vsel %vm187, 1.0, 0.0
  %190 = vmax.xlane.f32.xlu0 %v144
  %v191 = vpop.xlane.xlu0 %190
  %192 = vmax.xlane.f32.xlu0 %v145
  %v193 = vpop.xlane.xlu0 %192
  %v194 = vld [vmem:[#allocation2] sm:$0xff]
  %v195 = vld [vmem:[#allocation2 + $0x8] sm:$0xff]
  %v196 = vmax.f32 %v194, %v191
  %v197 = vmax.f32 %v195, %v193
  %v198 = vsub.f32 %v194, %v196
  %v199 = vsub.f32 %v195, %v197
  %v200 = vmul.f32 %v198, 1.442695
  %v201 = vpow.pop %v200
  %v202 = vmul.f32 %v199, 1.442695
  %v203 = vpow.pop %v202
  %205 = vset.pattern.permute.xlu0 0
  %206 = vperm.xlu0 %205, %v196
  %v207 = vpop.permute.xlu0 %206
  %210 = vset.pattern.permute.xlu0 0
  %211 = vperm.xlu0 %210, %v197
  %v212 = vpop.permute.xlu0 %211
  %v214 = vsub.f32 %v144, %v207
  %v215 = vsub.f32 %v145, %v212
  %v216 = vmul.f32 %v214, 1.442695
  %v217 = vpow.pop %v216
  %v218 = vmul.f32 %v215, 1.442695
  %v219 = vpow.pop %v218
  %v220 = vmul.f32 %v217, %v172
  %v221 = vmul.f32 %v219, %v173
  %v222 = vld [vmem:[#allocation3] sm:$0xff]
  %v223 = vld [vmem:[#allocation3 + $0x8] sm:$0xff]
  %v224 = vmul.f32 %v201, %v222
  %v225 = vmul.f32 %v203, %v223
  %226 = vadd.xlane.f32.xlu0 %v220
  %v227 = vpop.xlane.xlu0 %226
  %228 = vadd.xlane.f32.xlu0 %v221
  %v229 = vpop.xlane.xlu0 %228
  %v230 = vadd.f32 %v224, %v227
  %v231 = vadd.f32 %v225, %v229
  %vm232 = vcmask 7168
  %233 = vst.msk [vmem:[#allocation3] sm:$0xff] %vm232, %v230
  %234 = vst.msk [vmem:[#allocation3 + $0x8] sm:$0xff] %vm232, %v231
  %235 = vst.msk [vmem:[#allocation2] sm:$0xff] %vm232, %v196
  %236 = vst.msk [vmem:[#allocation2 + $0x8] sm:$0xff] %vm232, %v197
  %v237 = vld [vmem:[#allocation4] sm:$0xff]
  %v238 = vld [vmem:[#allocation4 + $0x8] sm:$0xff]
  %v239 = vmul.f32 %v188, %v144
  %v240 = vmul.f32 %v189, %v145
  %241 = vadd.xlane.f32.xlu0 %v239
  %v242 = vpop.xlane.xlu0 %241
  %243 = vadd.xlane.f32.xlu0 %v240
  %v244 = vpop.xlane.xlu0 %243
  %v245 = vadd.f32 %v237, %v242
  %v246 = vadd.f32 %v238, %v244
  %247 = vst.msk [vmem:[#allocation4] sm:$0xff] %vm232, %v245
  %248 = vst.msk [vmem:[#allocation4 + $0x8] sm:$0xff] %vm232, %v246
  %v249 = vld [vmem:[#allocation5] sm:$0xff]
  %v250 = vld [vmem:[#allocation5 + $0x8] sm:$0xff]
  %251 = vadd.xlane.f32.xlu0 %v188
  %v252 = vpop.xlane.xlu0 %251
  %253 = vadd.xlane.f32.xlu0 %v189
  %v254 = vpop.xlane.xlu0 %253
  %v255 = vadd.f32 %v249, %v252
  %v256 = vadd.f32 %v250, %v254
  %257 = vst.msk [vmem:[#allocation5] sm:$0xff] %vm232, %v255
  %258 = vst.msk [vmem:[#allocation5 + $0x8] sm:$0xff] %vm232, %v256
  // Predicated region
  $region22: #{_lambda_.1} parent=0 // pred_check
    %p259 = pneg %p18
  $region23: #{_lambda_.1} parent=0 // pred_check_branch
    %261 = sbr.rel (%p259) target = $region25
  $region24: #{_lambda_.1} parent=0 // pred_region
    %v262 = vld [vmem:[#allocation2] sm:$0xff]
    %v263 = vld [vmem:[#allocation2 + $0x8] sm:$0xff]
    %v264 = vld [vmem:[#allocation3] sm:$0xff]
    %v265 = vld [vmem:[#allocation3 + $0x8] sm:$0xff]
    %v266 = vlog2.pop %v264
    %v267 = vmul.f32 %v266, 0.6931472
    %v268 = vlog2.pop %v265
    %v269 = vmul.f32 %v268, 0.6931472
    %v270 = vadd.f32 %v262, %v267
    %v271 = vadd.f32 %v263, %v269
    %v272 = vld [vmem:[#allocation4] sm:$0xff]
    %v273 = vld [vmem:[#allocation4 + $0x8] sm:$0xff]
    %v274 = vld [vmem:[#allocation5] sm:$0xff]
    %v275 = vld [vmem:[#allocation5 + $0x8] sm:$0xff]
    %v276 = vrcp.pop %v274
    %v277 = vmul.f32 %v272, %v276
    %v278 = vrcp.pop %v275
    %v279 = vmul.f32 %v273, %v278
    %v280 = vsub.f32 %v277, %v270
    %v281 = vsub.f32 %v279, %v271
    %v282 = vmul.f32 %v280, -1.0
    %v283 = vmul.f32 %v281, -1.0
    %vm284 = vcmp.ge.s32.totalorder %v146, 0
    %vm285 = vcmp.ge.s32.totalorder %v147, 0
    %v286 = vsel %vm284, %v282, 0.0
    %v287 = vsel %vm285, %v283, 0.0
    %289 = vset.pattern.permute.xlu0 0
    %290 = vperm.xlu0 %289, %v286
    %v291 = vpop.permute.xlu0 %290
    %294 = vset.pattern.permute.xlu0 0
    %295 = vperm.xlu0 %294, %v287
    %v296 = vpop.permute.xlu0 %295
    %298 = vst [vmem:[%s4] sm:$0xff] %v291
    %299 = vst [vmem:[%s4 + $0x8] sm:$0xff] %v296
  $region25: #{_lambda_.1} parent=0 // pred_fallthru
    _
  // Predicated region
  $region26: #{_lambda_.1} parent=0 // pred_check
    _
  $region27: #{_lambda_.1} parent=0 // pred_check_branch
    %301 = sbr.rel (0) target = $region29
  $region28: #{_lambda_.1} parent=0 // pred_region
    _
  $region29: #{_lambda_.1} parent=0 // pred_fallthru
    _
  // Predicated region
  $region30: #{_lambda_.1} parent=0 // pred_check
    _
  $region31: #{_lambda_.1} parent=0 // pred_check_branch
    %303 = sbr.rel (0) target = $region33
  $region32: #{_lambda_.1} parent=0 // pred_region
    _
  $region33: #{_lambda_.1} parent=0 // pred_fallthru
    _

</llo_original>
